<compile_context>
chip_gen: v6e
topology: v6e:2x2x1
jax: 0.10.0
libtpu: 0.0.40
codegen_flags: <defaults>
</compile_context>

<pallas_src>
import jax
import jax.numpy as jnp
from jax.experimental import pallas as pl
from jax.experimental.pallas import tpu as pltpu

IN_FEATURES = 16
H1, H2, H3 = 64, 64, 16
OUT_FEATURES = 2
BIAS_PACK_W = 64  # widest bias row; narrower biases are zero-padded to this


def _round_up(n, m):
    return ((n + m - 1) // m) * m


def _cdiv(a, b):
    return -(-a // b)


def mlp_kernel(x_ref, w1_ref, w2_ref, w3_ref, w4_ref, b_ref, o_ref):
    """4 matmuls + 3 ReLUs on one batch tile; all weights resident in VMEM.

    x_ref : (TILE_B, 16)  f32  (cast to bf16 here, not in the wrapper)
    w1_ref: (16, 64)      bf16
    w2_ref: (64, 64)      bf16
    w3_ref: (64, 16)      bf16
    w4_ref: (16, 2)       bf16
    b_ref : (4, 64)       f32  (row k = bias of layer k+1, zero-padded to 64)
    o_ref : (TILE_B, 2)   f32
    """
    x = x_ref[...].astype(jnp.bfloat16)                                    # (tb, 16)
    h = jnp.dot(x, w1_ref[...], preferred_element_type=jnp.float32)       # (tb, 64)
    h = jnp.maximum(h + b_ref[0:1, :H1], 0.0).astype(jnp.bfloat16)
    h = jnp.dot(h, w2_ref[...], preferred_element_type=jnp.float32)       # (tb, 64)
    h = jnp.maximum(h + b_ref[1:2, :H2], 0.0).astype(jnp.bfloat16)
    h = jnp.dot(h, w3_ref[...], preferred_element_type=jnp.float32)       # (tb, 16)
    h = jnp.maximum(h + b_ref[2:3, :H3], 0.0).astype(jnp.bfloat16)
    h = jnp.dot(h, w4_ref[...], preferred_element_type=jnp.float32)       # (tb, 2)
    o_ref[...] = (h + b_ref[3:4, :OUT_FEATURES]).astype(o_ref.dtype)


def init_params(key):
    """Deterministic init mimicking torch.nn.Linear defaults
    (uniform(-1/sqrt(fan_in), 1/sqrt(fan_in)) for both W and b). Stored f32,
    shape (in_features, out_features) so the math is x @ W + b."""
    dims = [(IN_FEATURES, H1), (H1, H2), (H2, H3), (H3, OUT_FEATURES)]
    params = []
    for fan_in, fan_out in dims:
        key, kw, kb = jax.random.split(key, 3)
        bound = 1.0 / jnp.sqrt(jnp.float32(fan_in))
        w = jax.random.uniform(kw, (fan_in, fan_out), jnp.float32,
                               minval=-bound, maxval=bound)
        b = jax.random.uniform(kb, (1, fan_out), jnp.float32,
                               minval=-bound, maxval=bound)
        params.append((w, b))
    return params


def prepare_kernel_params(params):
    """Cast weights to bf16 at their native shapes (no K/N padding); pack the
    four biases into one (4, 64) f32 buffer (zero-padded rows)."""
    (w1, b1), (w2, b2), (w3, b3), (w4, b4) = params
    wq = tuple(w.astype(jnp.bfloat16) for w in (w1, w2, w3, w4))
    bpk = jnp.concatenate(
        [jnp.pad(b, ((0, 0), (0, BIAS_PACK_W - b.shape[1]))) for b in (b1, b2, b3, b4)],
        axis=0,
    ).astype(jnp.float32)                                   # (4, 64)
    return wq + (bpk,)


def _choose_tiling(B, max_tile_b):
    """Minimize batch padding, amortize per-step overhead, and (for v7x) keep
    an even number of grid steps so the parallel axis splits across both TCs."""
    n_steps = max(1, _cdiv(B, max_tile_b))
    if n_steps > 1 and n_steps % 2 == 1:
        n_steps += 1                      # v7x: even split over the 2 TensorCores
    tile_b = _round_up(max(_cdiv(B, n_steps), 1), 16)   # 16: bf16 sublane packing
    return tile_b, n_steps


def nn_input16_output2(image, kernel_params, *, max_tile_b=4096):
    """image: (B, C, H, W) NCHW with C*H*W == 16. Returns (B, 2) f32."""
    w1, w2, w3, w4, bpk = kernel_params
    B = image.shape[0]
    x = image.reshape(B, -1)                                 # (B, 16) f32, no cast here
    assert x.shape[1] == IN_FEATURES

    tile_b, n_steps = _choose_tiling(B, max_tile_b)
    b_pad = tile_b * n_steps
    if b_pad != B:                                           # pad only when needed
        x = jnp.pad(x, ((0, b_pad - B), (0, 0)))

    flops_per_row = 2 * (IN_FEATURES * H1 + H1 * H2 + H2 * H3 + H3 * OUT_FEATURES)
    weight_bytes = 2 * (IN_FEATURES * H1 + H1 * H2 + H2 * H3 + H3 * OUT_FEATURES) + 4 * 4 * BIAS_PACK_W
    cost = pl.CostEstimate(
        flops=int(B * flops_per_row),
        transcendentals=0,
        bytes_accessed=int(B * (IN_FEATURES * 4 + OUT_FEATURES * 4) + weight_bytes),
    )

    def resident(shape):
        # Constant index_map -> weights/biases stay in VMEM across all grid steps.
        return pl.BlockSpec(shape, lambda i: (0,) * len(shape))

    out = pl.pallas_call(
        mlp_kernel,
        out_shape=jax.ShapeDtypeStruct((b_pad, OUT_FEATURES), jnp.float32),
        grid_spec=pltpu.PrefetchScalarGridSpec(
            num_scalar_prefetch=0,
            grid=(n_steps,),
            in_specs=[
                pl.BlockSpec((tile_b, IN_FEATURES), lambda i: (i, 0)),
                resident(w1.shape),
                resident(w2.shape),
                resident(w3.shape),
                resident(w4.shape),
                resident(bpk.shape),
            ],
            out_specs=pl.BlockSpec((tile_b, OUT_FEATURES), lambda i: (i, 0)),
        ),
        compiler_params=pltpu.CompilerParams(
            dimension_semantics=("parallel",)),
        cost_estimate=cost,
    )(x, w1, w2, w3, w4, bpk)
    return out[:B]


def _reference(image, params):
    """Pure-JAX reference with the same bf16 operand quantization (f32 accumulate)."""
    h = image.reshape(image.shape[0], -1)
    h = h.astype(jnp.bfloat16).astype(jnp.float32)
    for i, (w, b) in enumerate(params):
        wq = w.astype(jnp.bfloat16).astype(jnp.float32)
        h = h @ wq + b
        if i < 3:
            h = jnp.maximum(h, 0.0).astype(jnp.bfloat16).astype(jnp.float32)
    return h


if __name__ == "__main__":
    key = jax.random.PRNGKey(0)
    key, kx1, kx2 = jax.random.split(key, 3)
    params = init_params(key)
    kparams = prepare_kernel_params(params)

    # Small shape matching the module: NCHW (2, 1, 4, 4) -> 16 features.
    image = jax.random.normal(kx1, (2, 1, 4, 4), jnp.float32)
    out = jax.block_until_ready(nn_input16_output2(image, kparams))
    assert out.shape == (2, 2)
    ref = _reference(image, params)
    assert jnp.allclose(out, ref, atol=1e-2, rtol=1e-2)

    # Exercise the multi-step grid (even step count) + batch-padding path.
    image2 = jax.random.normal(kx2, (130, 1, 4, 4), jnp.float32)
    out2 = jax.block_until_ready(
        nn_input16_output2(image2, kparams, max_tile_b=64))
    assert out2.shape == (130, 2)
    ref2 = _reference(image2, params)
    assert jnp.allclose(out2, ref2, atol=1e-2, rtol=1e-2)

    print("KERNEL_OK")
</pallas_src>

<mosaic_0001>
module attributes {stable_mosaic.version = 11 : i64} {
  func.func @mlp_kernel(%arg0: i32, %arg1: memref<16x16xf32, #tpu.memory_space<vmem>>, %arg2: memref<16x64xbf16, #tpu.memory_space<vmem>>, %arg3: memref<64x64xbf16, #tpu.memory_space<vmem>>, %arg4: memref<64x16xbf16, #tpu.memory_space<vmem>>, %arg5: memref<16x2xbf16, #tpu.memory_space<vmem>>, %arg6: memref<4x64xf32, #tpu.memory_space<vmem>>, %arg7: memref<16x2xf32, #tpu.memory_space<vmem>>) attributes {dimension_semantics = [#tpu.dimension_semantics<parallel>], iteration_bounds = array<i64: 1>, scalar_prefetch = 0 : i64, scratch_operands = 0 : i64, tpu.core_type = #tpu.core_type<tc>, window_params = [{transform_indices = @transform_0, window_bounds = array<i64: 16, 16>}, {pipeline_mode = #tpu.pipeline_mode<synchronous>, transform_indices = @transform_1, window_bounds = array<i64: 16, 64>}, {pipeline_mode = #tpu.pipeline_mode<synchronous>, transform_indices = @transform_2, window_bounds = array<i64: 64, 64>}, {pipeline_mode = #tpu.pipeline_mode<synchronous>, transform_indices = @transform_3, window_bounds = array<i64: 64, 16>}, {pipeline_mode = #tpu.pipeline_mode<synchronous>, transform_indices = @transform_4, window_bounds = array<i64: 16, 2>}, {pipeline_mode = #tpu.pipeline_mode<synchronous>, transform_indices = @transform_5, window_bounds = array<i64: 4, 64>}, {transform_indices = @transform_6, window_bounds = array<i64: 16, 2>}]} {
    %c0 = arith.constant 0 : index
    %c0_0 = arith.constant 0 : index
    %0 = vector.load %arg1[%c0, %c0_0] : memref<16x16xf32, #tpu.memory_space<vmem>>, vector<16x16xf32>
    %1 = arith.truncf %0 : vector<16x16xf32> to vector<16x16xbf16>
    %c0_1 = arith.constant 0 : index
    %c0_2 = arith.constant 0 : index
    %2 = vector.load %arg2[%c0_1, %c0_2] : memref<16x64xbf16, #tpu.memory_space<vmem>>, vector<16x64xbf16>
    %cst = arith.constant dense<0.000000e+00> : vector<16x64xf32>
    %3 = tpu.matmul %1, %2, %cst {dimension_numbers = #tpu.dot_dimension_numbers<[1], [0], [0], [1], [0, 0, 1, 1], [], []>} : vector<16x16xbf16>, vector<16x64xbf16>, vector<16x64xf32> -> vector<16x64xf32>
    %c0_3 = arith.constant 0 : index
    %c0_4 = arith.constant 0 : index
    %4 = vector.load %arg6[%c0_3, %c0_4] : memref<4x64xf32, #tpu.memory_space<vmem>>, vector<1x64xf32>
    %5 = vector.broadcast %4 : vector<1x64xf32> to vector<16x64xf32>
    %6 = arith.addf %3, %5 : vector<16x64xf32>
    %cst_5 = arith.constant 0.000000e+00 : f32
    %7 = vector.broadcast %cst_5 : f32 to vector<16x64xf32>
    %8 = arith.maximumf %6, %7 : vector<16x64xf32>
    %9 = arith.truncf %8 : vector<16x64xf32> to vector<16x64xbf16>
    %c0_6 = arith.constant 0 : index
    %c0_7 = arith.constant 0 : index
    %10 = vector.load %arg3[%c0_6, %c0_7] : memref<64x64xbf16, #tpu.memory_space<vmem>>, vector<64x64xbf16>
    %cst_8 = arith.constant dense<0.000000e+00> : vector<16x64xf32>
    %11 = tpu.matmul %9, %10, %cst_8 {dimension_numbers = #tpu.dot_dimension_numbers<[1], [0], [0], [1], [0, 0, 1, 1], [], []>} : vector<16x64xbf16>, vector<64x64xbf16>, vector<16x64xf32> -> vector<16x64xf32>
    %c1 = arith.constant 1 : index
    %c0_9 = arith.constant 0 : index
    %12 = vector.load %arg6[%c1, %c0_9] : memref<4x64xf32, #tpu.memory_space<vmem>>, vector<1x64xf32>
    %13 = vector.broadcast %12 : vector<1x64xf32> to vector<16x64xf32>
    %14 = arith.addf %11, %13 : vector<16x64xf32>
    %cst_10 = arith.constant 0.000000e+00 : f32
    %15 = vector.broadcast %cst_10 : f32 to vector<16x64xf32>
    %16 = arith.maximumf %14, %15 : vector<16x64xf32>
    %17 = arith.truncf %16 : vector<16x64xf32> to vector<16x64xbf16>
    %c0_11 = arith.constant 0 : index
    %c0_12 = arith.constant 0 : index
    %18 = vector.load %arg4[%c0_11, %c0_12] : memref<64x16xbf16, #tpu.memory_space<vmem>>, vector<64x16xbf16>
    %cst_13 = arith.constant dense<0.000000e+00> : vector<16x16xf32>
    %19 = tpu.matmul %17, %18, %cst_13 {dimension_numbers = #tpu.dot_dimension_numbers<[1], [0], [0], [1], [0, 0, 1, 1], [], []>} : vector<16x64xbf16>, vector<64x16xbf16>, vector<16x16xf32> -> vector<16x16xf32>
    %c2 = arith.constant 2 : index
    %c0_14 = arith.constant 0 : index
    %20 = vector.load %arg6[%c2, %c0_14] : memref<4x64xf32, #tpu.memory_space<vmem>>, vector<1x16xf32>
    %21 = vector.broadcast %20 : vector<1x16xf32> to vector<16x16xf32>
    %22 = arith.addf %19, %21 : vector<16x16xf32>
    %cst_15 = arith.constant 0.000000e+00 : f32
    %23 = vector.broadcast %cst_15 : f32 to vector<16x16xf32>
    %24 = arith.maximumf %22, %23 : vector<16x16xf32>
    %25 = arith.truncf %24 : vector<16x16xf32> to vector<16x16xbf16>
    %c0_16 = arith.constant 0 : index
    %c0_17 = arith.constant 0 : index
    %26 = vector.load %arg5[%c0_16, %c0_17] : memref<16x2xbf16, #tpu.memory_space<vmem>>, vector<16x2xbf16>
    %cst_18 = arith.constant dense<0.000000e+00> : vector<16x2xf32>
    %27 = tpu.matmul %25, %26, %cst_18 {dimension_numbers = #tpu.dot_dimension_numbers<[1], [0], [0], [1], [0, 0, 1, 1], [], []>} : vector<16x16xbf16>, vector<16x2xbf16>, vector<16x2xf32> -> vector<16x2xf32>
    %c3 = arith.constant 3 : index
    %c0_19 = arith.constant 0 : index
    %28 = vector.load %arg6[%c3, %c0_19] : memref<4x64xf32, #tpu.memory_space<vmem>>, vector<1x2xf32>
    %29 = vector.broadcast %28 : vector<1x2xf32> to vector<16x2xf32>
    %30 = arith.addf %27, %29 : vector<16x2xf32>
    %c0_20 = arith.constant 0 : index
    %c0_21 = arith.constant 0 : index
    %31 = vector.load %arg7[%c0_20, %c0_21] : memref<16x2xf32, #tpu.memory_space<vmem>>, vector<16x2xf32>
    tpu.vector_store %arg7[%c0_20, %c0_21], %30 {strides = array<i32>} : memref<16x2xf32, #tpu.memory_space<vmem>>, vector<16x2xf32>,
    return
  }
  func.func @transform_0(%arg0: i32) -> (i32, i32) {
    %c0_i32 = arith.constant 0 : i32
    %c0_i32_0 = arith.constant 0 : i32
    return %arg0, %c0_i32 : i32, i32
  }
  func.func @transform_1(%arg0: i32) -> (i32, i32) {
    %c0_i32 = arith.constant 0 : i32
    %c0_i32_0 = arith.constant 0 : i32
    %c0_i32_1 = arith.constant 0 : i32
    return %c0_i32, %c0_i32_0 : i32, i32
  }
  func.func @transform_2(%arg0: i32) -> (i32, i32) {
    %c0_i32 = arith.constant 0 : i32
    %c0_i32_0 = arith.constant 0 : i32
    %c0_i32_1 = arith.constant 0 : i32
    return %c0_i32, %c0_i32_0 : i32, i32
  }
  func.func @transform_3(%arg0: i32) -> (i32, i32) {
    %c0_i32 = arith.constant 0 : i32
    %c0_i32_0 = arith.constant 0 : i32
    %c0_i32_1 = arith.constant 0 : i32
    return %c0_i32, %c0_i32_0 : i32, i32
  }
  func.func @transform_4(%arg0: i32) -> (i32, i32) {
    %c0_i32 = arith.constant 0 : i32
    %c0_i32_0 = arith.constant 0 : i32
    %c0_i32_1 = arith.constant 0 : i32
    return %c0_i32, %c0_i32_0 : i32, i32
  }
  func.func @transform_5(%arg0: i32) -> (i32, i32) {
    %c0_i32 = arith.constant 0 : i32
    %c0_i32_0 = arith.constant 0 : i32
    %c0_i32_1 = arith.constant 0 : i32
    return %c0_i32, %c0_i32_0 : i32, i32
  }
  func.func @transform_6(%arg0: i32) -> (i32, i32) {
    %c0_i32 = arith.constant 0 : i32
    %c0_i32_0 = arith.constant 0 : i32
    return %arg0, %c0_i32 : i32, i32
  }
}

</mosaic_0001>

<llo_original>
// kernel: tpu_custom_call.1
$region0: #{tpu_custom_call.1}
  #allocation0 [shape = 'u32[]', space=smem, size = 0x4, offset = 0x4, fixed_abs, tag = 'smem constant byte address 0x4 - core index']
  #allocation1 [shape = 'u32[144,128]{1,0:T(1,128)}', space=vmem, size = 0x12000, scoped, tag = 'internal scratch']
  %s0 = inlined_call_operand.vmem [shape: f32[16,16], index: 0, kind: input, shape index: {}]
  %s1 = inlined_call_operand.hbm [shape: bf16[16,64], index: 1, kind: input, shape index: {}]
  %s2 = inlined_call_operand.vmem [shape: bf16[64,64], index: 2, kind: input, shape index: {}]
  %s3 = inlined_call_operand.vmem [shape: bf16[64,16], index: 3, kind: input, shape index: {}]
  %s4 = inlined_call_operand.vmem [shape: bf16[16,2], index: 4, kind: input, shape index: {}]
  %s5 = inlined_call_operand.vmem [shape: f32[4,64], index: 5, kind: input, shape index: {}]
  %s6 = inlined_call_operand.vmem [shape: f32[16,2], index: 6, kind: output, shape index: {}]
  %s7 = sld [smem:[#allocation0]]
  $region38: #{tpu_custom_call.1} parent=0
    _
  %s9 = ssub.s32 1, %s7
  %s10 = scalar_select 0, %s9, %s7
  $region1: #{tpu_custom_call.1} parent=0
    #allocation2 [shape = 'u8[4096]{0}', space=vmem, size = 0x1000, scoped, tag = 'input window, operand 1, single buffered']
    #allocation3 [shape = 's32[1]{0}', space=sflag, size = 0x4, scoped, tag = 'scoped memory for tpu_custom_call.1']
    %11 = vsyncpa [#allocation3], 0
    // Predicated region
    $region2: #{tpu_custom_call.1} parent=1 // pred_check
      _
    $region3: #{tpu_custom_call.1} parent=1 // pred_check_branch
      %13 = sbr.rel (0) target = $region5
    $region4: #{tpu_custom_call.1} parent=1 // pred_region
      _
    $region5: #{tpu_custom_call.1} parent=1 // pred_fallthru
      _
    // Predicated region
    $region6: #{tpu_custom_call.1} parent=1 // pred_check
      _
    $region7: #{tpu_custom_call.1} parent=1 // pred_check_branch
      %15 = sbr.rel (0) target = $region9
    $region8: #{tpu_custom_call.1} parent=1 // pred_region
      %s17 = ssub.s32 128, 128
      %18 = vsyncadd [#allocation3], %s17
      %s19 = sshll.u32 [#allocation2], 4
      %s20 = int_to_ptr.vmem [resolvable:$true] %s19
      %25 = dma.hbm_to_vmem [thread:$0]  %s1, 128, %s20, [#allocation3], 64, 64, 4
    $region9: #{tpu_custom_call.1} parent=1 // pred_fallthru
      _
    // Predicated region
    $region10: #{tpu_custom_call.1} parent=1 // pred_check
      _
    $region11: #{tpu_custom_call.1} parent=1 // pred_check_branch
      %27 = sbr.rel (0) target = $region13
    $region12: #{tpu_custom_call.1} parent=1 // pred_region
      _
    $region13: #{tpu_custom_call.1} parent=1 // pred_fallthru
      _
    // Predicated region
    $region14: #{tpu_custom_call.1} parent=1 // pred_check
      _
    $region15: #{tpu_custom_call.1} parent=1 // pred_check_branch
      %29 = sbr.rel (0) target = $region17
    $region16: #{tpu_custom_call.1} parent=1 // pred_region
      _
    $region17: #{tpu_custom_call.1} parent=1 // pred_fallthru
      _
    // Predicated region
    $region18: #{tpu_custom_call.1} parent=1 // pred_check
      _
    $region19: #{tpu_custom_call.1} parent=1 // pred_check_branch
      %31 = sbr.rel (0) target = $region21
    $region20: #{tpu_custom_call.1} parent=1 // pred_region
      _
    $region21: #{tpu_custom_call.1} parent=1 // pred_fallthru
      _
    // Predicated region
    $region22: #{tpu_custom_call.1} parent=1 // pred_check
      _
    $region23: #{tpu_custom_call.1} parent=1 // pred_check_branch
      %33 = sbr.rel (0) target = $region25
    $region24: #{tpu_custom_call.1} parent=1 // pred_region
      _
    $region25: #{tpu_custom_call.1} parent=1 // pred_fallthru
      _
    // Predicated region
    $region26: #{tpu_custom_call.1} parent=1 // pred_check
      _
    $region27: #{tpu_custom_call.1} parent=1 // pred_check_branch
      %35 = sbr.rel (0) target = $region29
    $region28: #{tpu_custom_call.1} parent=1 // pred_region
      %36 = dma.done [#allocation3], 128
    $region29: #{tpu_custom_call.1} parent=1 // pred_fallthru
      _
    %v38 = vld [vmem:[%s0] sm:$0xff]
    %v39 = vld [vmem:[%s0 + $0x8] sm:$0xff]
    %v40 = vpack.c.bf16 %v39, %v38
    %v41 = vld [vmem:[#allocation2] sm:$0xf]
    %v42 = vld [vmem:[#allocation2 + $0x4] sm:$0xf]
    %v43 = vld [vmem:[%s5] sm:$0x1]
    %v44 = vlaneseq
    %v45 = vshrl.u32 %v44, 7
    %v46 = vsub.s32 0, %v45
    %v47 = vrot.slane %v43, %v46
    %v50 = vunpack.c.l.b16 %v41
    %v51 = vunpack.c.l.b16 %v42
    %v52 = vpack.c.b16 %v51, %v50
    %vm54 = vcmask 130048
    %v56 = vsel %vm54, %v40, 0
    %58 = vmatprep.subr.bf16.mxu0 0
    %59 = vmatpush1.bf16.msra.mxu0 0
    %60 = vmatprep.subr.bf16.mxu0 0
    %61 = vmatpush1.bf16.msra.mxu0 0
    %62 = vmatprep.subr.bf16.mxu0 0
    %63 = vmatpush1.bf16.msra.mxu0 0
    %64 = vmatprep.subr.bf16.mxu0 0
    %65 = vmatpush1.bf16.msra.mxu0 0
    %66 = vmatprep.subr.bf16.mxu0 0
    %67 = vmatpush1.bf16.msra.mxu0 0
    %68 = vmatprep.subr.bf16.mxu0 0
    %69 = vmatpush1.bf16.msra.mxu0 0
    %70 = vmatprep.subr.bf16.mxu0 0
    %71 = vmatpush1.bf16.msra.mxu0 0
    %72 = vmatprep.subr.bf16.mxu0 0
    %73 = vmatpush1.bf16.msra.mxu0 %v52
    %74 = vmatprep.subr.bf16.mxu0 0
    %75 = vmatpush2.bf16.msra.mxu0 0
    %76 = vmatprep.subr.bf16.mxu0 0
    %77 = vmatpush2.bf16.msra.mxu0 0
    %78 = vmatprep.subr.bf16.mxu0 0
    %79 = vmatpush2.bf16.msra.mxu0 0
    %80 = vmatprep.subr.bf16.mxu0 0
    %81 = vmatpush2.bf16.msra.mxu0 0
    %82 = vmatprep.subr.bf16.mxu0 0
    %83 = vmatpush2.bf16.msra.mxu0 0
    %84 = vmatprep.subr.bf16.mxu0 0
    %85 = vmatpush2.bf16.msra.mxu0 0
    %86 = vmatprep.subr.bf16.mxu0 0
    %87 = vmatpush2.bf16.msra.mxu0 0
    %88 = vmatprep.subr.bf16.mxu0 0
    %89 = vmatpush2.bf16.msra.mxu0 0
    %90 = vmatprep.mubr.bf16.mxu0 0
    %91 = vmatmul.mubr.bf16.gmra.mxu0 %v56
    %v92 = vpop.f32.mrf.mxu0
    %v93 = vadd.f32 %v47, %v92
    %v94 = vpop.f32.mrf.mxu0
    %v95 = vpop.f32.mrf.mxu0
    %v96 = vadd.f32 %v47, %v95
    %v97 = vpop.f32.mrf.mxu0
    %98 = vdwg.mxu0
    %v99 = vmax.f32 %v93, 0.0
    %v100 = vmax.f32 %v96, 0.0
    %v101 = vpack.c.bf16 %v100, %v99
    %v102 = vld [vmem:[%s2] sm:$0xf]
    %v103 = vld [vmem:[%s2 + $0x4] sm:$0xf]
    %v104 = vld [vmem:[%s2 + $0x8] sm:$0xf]
    %v105 = vld [vmem:[%s2 + $0xc] sm:$0xf]
    %v106 = vld [vmem:[%s2 + $0x10] sm:$0xf]
    %v107 = vld [vmem:[%s2 + $0x14] sm:$0xf]
    %v108 = vld [vmem:[%s2 + $0x18] sm:$0xf]
    %v109 = vld [vmem:[%s2 + $0x1c] sm:$0xf]
    %v110 = vld [vmem:[%s5 + $0x1] sm:$0x1]
    %v111 = vlaneseq
    %v112 = vshrl.u32 %v111, 7
    %v113 = vsub.s32 0, %v112
    %v114 = vrot.slane %v110, %v113
    %v123 = vunpack.c.l.b16 %v102
    %v124 = vunpack.c.l.b16 %v103
    %v125 = vunpack.c.l.b16 %v104
    %v126 = vunpack.c.l.b16 %v105
    %v127 = vunpack.c.l.b16 %v106
    %v128 = vunpack.c.l.b16 %v107
    %v129 = vunpack.c.l.b16 %v108
    %v130 = vunpack.c.l.b16 %v109
    %v131 = vpack.c.b16 %v124, %v123
    %v132 = vpack.c.b16 %v126, %v125
    %v133 = vpack.c.b16 %v128, %v127
    %v134 = vpack.c.b16 %v130, %v129
    %vm139 = vcmask 523264
    %v141 = vsel %vm139, %v101, 0
    %143 = vmatprep.subr.bf16.mxu0 0
    %144 = vmatpush1.bf16.msra.mxu0 0
    %145 = vmatprep.subr.bf16.mxu0 0
    %146 = vmatpush1.bf16.msra.mxu0 0
    %147 = vmatprep.subr.bf16.mxu0 0
    %148 = vmatpush1.bf16.msra.mxu0 0
    %149 = vmatprep.subr.bf16.mxu0 0
    %150 = vmatpush1.bf16.msra.mxu0 0
    %151 = vmatprep.subr.bf16.mxu0 0
    %152 = vmatpush1.bf16.msra.mxu0 %v134
    %153 = vmatprep.subr.bf16.mxu0 0
    %154 = vmatpush1.bf16.msra.mxu0 %v133
    %155 = vmatprep.subr.bf16.mxu0 0
    %156 = vmatpush1.bf16.msra.mxu0 %v132
    %157 = vmatprep.subr.bf16.mxu0 0
    %158 = vmatpush1.bf16.msra.mxu0 %v131
    %159 = vmatprep.subr.bf16.mxu0 0
    %160 = vmatpush2.bf16.msra.mxu0 0
    %161 = vmatprep.subr.bf16.mxu0 0
    %162 = vmatpush2.bf16.msra.mxu0 0
    %163 = vmatprep.subr.bf16.mxu0 0
    %164 = vmatpush2.bf16.msra.mxu0 0
    %165 = vmatprep.subr.bf16.mxu0 0
    %166 = vmatpush2.bf16.msra.mxu0 0
    %167 = vmatprep.subr.bf16.mxu0 0
    %168 = vmatpush2.bf16.msra.mxu0 0
    %169 = vmatprep.subr.bf16.mxu0 0
    %170 = vmatpush2.bf16.msra.mxu0 0
    %171 = vmatprep.subr.bf16.mxu0 0
    %172 = vmatpush2.bf16.msra.mxu0 0
    %173 = vmatprep.subr.bf16.mxu0 0
    %174 = vmatpush2.bf16.msra.mxu0 0
    %175 = vmatprep.mubr.bf16.mxu0 0
    %176 = vmatmul.mubr.bf16.gmra.mxu0 %v141
    %v177 = vpop.f32.mrf.mxu0
    %v178 = vadd.f32 %v114, %v177
    %v179 = vpop.f32.mrf.mxu0
    %v180 = vpop.f32.mrf.mxu0
    %v181 = vadd.f32 %v114, %v180
    %v182 = vpop.f32.mrf.mxu0
    %183 = vdwg.mxu0
    %v184 = vmax.f32 %v178, 0.0
    %v185 = vmax.f32 %v181, 0.0
    %v186 = vpack.c.bf16 %v185, %v184
    %v187 = vld [vmem:[%s3] sm:$0xf]
    %v188 = vld [vmem:[%s3 + $0x4] sm:$0xf]
    %v189 = vld [vmem:[%s3 + $0x8] sm:$0xf]
    %v190 = vld [vmem:[%s3 + $0xc] sm:$0xf]
    %v191 = vld [vmem:[%s3 + $0x10] sm:$0xf]
    %v192 = vld [vmem:[%s3 + $0x14] sm:$0xf]
    %v193 = vld [vmem:[%s3 + $0x18] sm:$0xf]
    %v194 = vld [vmem:[%s3 + $0x1c] sm:$0xf]
    %v195 = vld [vmem:[%s5 + $0x2] sm:$0x1]
    %v196 = vlaneseq
    %v197 = vshrl.u32 %v196, 7
    %v198 = vsub.s32 0, %v197
    %v199 = vrot.slane %v195, %v198
    %v208 = vunpack.c.l.b16 %v187
    %v209 = vunpack.c.l.b16 %v188
    %v210 = vunpack.c.l.b16 %v189
    %v211 = vunpack.c.l.b16 %v190
    %v212 = vunpack.c.l.b16 %v191
    %v213 = vunpack.c.l.b16 %v192
    %v214 = vunpack.c.l.b16 %v193
    %v215 = vunpack.c.l.b16 %v194
    %v216 = vpack.c.b16 %v209, %v208
    %v217 = vpack.c.b16 %v211, %v210
    %v218 = vpack.c.b16 %v213, %v212
    %v219 = vpack.c.b16 %v215, %v214
    %v225 = vsel %vm139, %v186, 0
    %227 = vmatprep.subr.bf16.mxu0 0
    %228 = vmatpush1.bf16.msra.mxu0 0
    %229 = vmatprep.subr.bf16.mxu0 0
    %230 = vmatpush1.bf16.msra.mxu0 0
    %231 = vmatprep.subr.bf16.mxu0 0
    %232 = vmatpush1.bf16.msra.mxu0 0
    %233 = vmatprep.subr.bf16.mxu0 0
    %234 = vmatpush1.bf16.msra.mxu0 0
    %235 = vmatprep.subr.bf16.mxu0 0
    %236 = vmatpush1.bf16.msra.mxu0 %v219
    %237 = vmatprep.subr.bf16.mxu0 0
    %238 = vmatpush1.bf16.msra.mxu0 %v218
    %239 = vmatprep.subr.bf16.mxu0 0
    %240 = vmatpush1.bf16.msra.mxu0 %v217
    %241 = vmatprep.subr.bf16.mxu0 0
    %242 = vmatpush1.bf16.msra.mxu0 %v216
    %243 = vmatprep.subr.bf16.mxu0 0
    %244 = vmatpush2.bf16.msra.mxu0 0
    %245 = vmatprep.subr.bf16.mxu0 0
    %246 = vmatpush2.bf16.msra.mxu0 0
    %247 = vmatprep.subr.bf16.mxu0 0
    %248 = vmatpush2.bf16.msra.mxu0 0
    %249 = vmatprep.subr.bf16.mxu0 0
    %250 = vmatpush2.bf16.msra.mxu0 0
    %251 = vmatprep.subr.bf16.mxu0 0
    %252 = vmatpush2.bf16.msra.mxu0 0
    %253 = vmatprep.subr.bf16.mxu0 0
    %254 = vmatpush2.bf16.msra.mxu0 0
    %255 = vmatprep.subr.bf16.mxu0 0
    %256 = vmatpush2.bf16.msra.mxu0 0
    %257 = vmatprep.subr.bf16.mxu0 0
    %258 = vmatpush2.bf16.msra.mxu0 0
    %259 = vmatprep.mubr.bf16.mxu0 0
    %260 = vmatmul.mubr.bf16.gmra.mxu0 %v225
    %v261 = vpop.f32.mrf.mxu0
    %v262 = vadd.f32 %v199, %v261
    %v263 = vpop.f32.mrf.mxu0
    %v264 = vpop.f32.mrf.mxu0
    %v265 = vadd.f32 %v199, %v264
    %v266 = vpop.f32.mrf.mxu0
    %267 = vdwg.mxu0
    %v268 = vmax.f32 %v262, 0.0
    %v269 = vmax.f32 %v265, 0.0
    %v270 = vpack.c.bf16 %v269, %v268
    %v271 = vld [vmem:[%s4] sm:$0xf]
    %v272 = vld [vmem:[%s4 + $0x4] sm:$0xf]
    %v273 = vld [vmem:[%s5 + $0x3] sm:$0x1]
    %v274 = vlaneseq
    %v275 = vshrl.u32 %v274, 7
    %v276 = vsub.s32 0, %v275
    %v277 = vrot.slane %v273, %v276
    %v280 = vunpack.c.l.b16 %v271
    %v281 = vunpack.c.l.b16 %v272
    %v282 = vpack.c.b16 %v281, %v280
    %v285 = vsel %vm54, %v270, 0
    %287 = vmatprep.subr.bf16.mxu0 0
    %288 = vmatpush1.bf16.msra.mxu0 0
    %289 = vmatprep.subr.bf16.mxu0 0
    %290 = vmatpush1.bf16.msra.mxu0 0
    %291 = vmatprep.subr.bf16.mxu0 0
    %292 = vmatpush1.bf16.msra.mxu0 0
    %293 = vmatprep.subr.bf16.mxu0 0
    %294 = vmatpush1.bf16.msra.mxu0 0
    %295 = vmatprep.subr.bf16.mxu0 0
    %296 = vmatpush1.bf16.msra.mxu0 0
    %297 = vmatprep.subr.bf16.mxu0 0
    %298 = vmatpush1.bf16.msra.mxu0 0
    %299 = vmatprep.subr.bf16.mxu0 0
    %300 = vmatpush1.bf16.msra.mxu0 0
    %301 = vmatprep.subr.bf16.mxu0 0
    %302 = vmatpush1.bf16.msra.mxu0 %v282
    %303 = vmatprep.subr.bf16.mxu0 0
    %304 = vmatpush2.bf16.msra.mxu0 0
    %305 = vmatprep.subr.bf16.mxu0 0
    %306 = vmatpush2.bf16.msra.mxu0 0
    %307 = vmatprep.subr.bf16.mxu0 0
    %308 = vmatpush2.bf16.msra.mxu0 0
    %309 = vmatprep.subr.bf16.mxu0 0
    %310 = vmatpush2.bf16.msra.mxu0 0
    %311 = vmatprep.subr.bf16.mxu0 0
    %312 = vmatpush2.bf16.msra.mxu0 0
    %313 = vmatprep.subr.bf16.mxu0 0
    %314 = vmatpush2.bf16.msra.mxu0 0
    %315 = vmatprep.subr.bf16.mxu0 0
    %316 = vmatpush2.bf16.msra.mxu0 0
    %317 = vmatprep.subr.bf16.mxu0 0
    %318 = vmatpush2.bf16.msra.mxu0 0
    %319 = vmatprep.mubr.bf16.mxu0 0
    %320 = vmatmul.mubr.bf16.gmra.mxu0 %v285
    %v321 = vpop.f32.mrf.mxu0
    %v322 = vadd.f32 %v277, %v321
    %v323 = vpop.f32.mrf.mxu0
    %v324 = vpop.f32.mrf.mxu0
    %v325 = vadd.f32 %v277, %v324
    %v326 = vpop.f32.mrf.mxu0
    %327 = vdwg.mxu0
    %vm328 = vcmask 15360
    %329 = vst.msk [vmem:[%s6] sm:$0xff] %vm328, %v322
    %330 = vst.msk [vmem:[%s6 + $0x8] sm:$0xff] %vm328, %v325
    // Predicated region
    $region30: #{tpu_custom_call.1} parent=1 // pred_check
      _
    $region31: #{tpu_custom_call.1} parent=1 // pred_check_branch
      %332 = sbr.rel (0) target = $region33
    $region32: #{tpu_custom_call.1} parent=1 // pred_region
      _
    $region33: #{tpu_custom_call.1} parent=1 // pred_fallthru
      _
    // Predicated region
    $region34: #{tpu_custom_call.1} parent=1 // pred_check
      _
    $region35: #{tpu_custom_call.1} parent=1 // pred_check_branch
      %334 = sbr.rel (0) target = $region37
    $region36: #{tpu_custom_call.1} parent=1 // pred_region
      _
    $region37: #{tpu_custom_call.1} parent=1 // pred_fallthru
      _
    %335 = vsyncpa [#allocation3], 1

</llo_original>
